<compile_context>
chip_gen: v6e
topology: v6e:2x2x1
jax: 0.10.0
libtpu: 0.0.40
codegen_flags: <defaults>
</compile_context>

<pallas_src>
from functools import partial

import jax
import jax.numpy as jnp
from jax import lax
from jax.experimental import pallas as pl
from jax.experimental.pallas import tpu as pltpu


# ---------------------------------------------------------------------------
# Kernel 1: online-softmax accumulation of the (transposed) context matrix.
# ---------------------------------------------------------------------------
def _context_kernel(dw_ref, wk_ref, wv_ref, ctx_ref, m_sc, l_sc, num_sc, *, scale):
    t = pl.program_id(1)

    @pl.when(t == 0)
    def _():
        m_sc[...] = jnp.full_like(m_sc, -jnp.inf)
        l_sc[...] = jnp.zeros_like(l_sc)
        num_sc[...] = jnp.zeros_like(num_sc)

    dw = dw_ref[0]                                                     # (tK, dim)
    # Projections: operands stay in the input dtype (bf16 in prod), f32 accumulation.
    k = jnp.dot(dw, wk_ref[...], preferred_element_type=jnp.float32)  # (tK, inner)
    v = jnp.dot(dw, wv_ref[...], preferred_element_type=jnp.float32)  # (tK, inner)

    # Online softmax over the sequence (N) axis; columns (k-features) independent.
    m_prev = m_sc[...]                                                 # (1, inner)
    m_new = jnp.maximum(m_prev, jnp.max(k, axis=0, keepdims=True))
    alpha = jnp.exp(m_prev - m_new)                                    # (1, inner)
    p = jnp.exp(k - m_new)                                             # (tK, inner)

    l_sc[...] = alpha * l_sc[...] + jnp.sum(p, axis=0, keepdims=True)

    # Accumulate the context TRANSPOSED: num_sc[e, c] += sum_n v[n, e] * p[n, c].
    # Contraction over dim 0 of both operands (splash-attention TN_DIM_NUMBERS)
    # -> the MXU consumes p/v directly (no explicit .T through the XLU), and the
    # alpha / 1/l rescales are plain row (lane) broadcasts.
    p_c = p.astype(dw.dtype)
    v_c = v.astype(dw.dtype)
    num_t = lax.dot_general(v_c, p_c, dimension_numbers=(((0,), (0,)), ((), ())),
                            preferred_element_type=jnp.float32)       # (E, C)
    num_sc[...] = alpha * num_sc[...] + num_t
    m_sc[...] = m_new

    @pl.when(t == pl.num_programs(1) - 1)
    def _():
        # ctx[c, e] = scale * num[e, c] / l[c]; scale folded in; one (inner, inner)
        # transpose per batch.  Emitted directly in the compute dtype.
        inv_l = scale / l_sc[...]                                      # (1, C)
        ctx_ref[0] = jnp.transpose(num_sc[...] * inv_l).astype(ctx_ref.dtype)


# ---------------------------------------------------------------------------
# Kernel 2: streamed q-path (q softmax, fused q@[ctx|ones], GELU, output 1x1 conv).
# ---------------------------------------------------------------------------
def _output_kernel(x_ref, ctx_ref, wq_ref, wout_ref, bout_ref, o_ref, *, inner):
    x = x_ref[0]                                                       # (tQ, dim)
    cdt = x.dtype

    q = jnp.dot(x, wq_ref[...], preferred_element_type=jnp.float32)   # (tQ, inner)

    # Per-head softmax over the feature axis with NO head slicing: subtract the
    # global row max (cancels inside each head's softmax), exponentiate, and get
    # numerator AND per-head denominator from ONE matmul against the fused RHS
    # [ctx_masked | ones_blockdiag] prepared in the wrapper.
    q = q - jnp.max(q, axis=-1, keepdims=True)
    e = jnp.exp(q).astype(cdt)                                         # (tQ, inner)

    res = jnp.dot(e, ctx_ref[0], preferred_element_type=jnp.float32)  # (tQ, 2*inner)
    num = res[:, :inner]
    den = res[:, inner:]
    attn = num * pl.reciprocal(den, approx=True)   # EUP; == (softmax_h(q)*scale) @ ctx_h

    # tanh-GELU runs on the EUP; max abs deviation from exact-erf GELU ~3e-4,
    # well inside the 1e-2 acceptance tolerance.
    # TODO(synk): switch to exact-erf GELU if bit-faithfulness to nn.GELU() is required.
    g = jax.nn.gelu(attn, approximate=True)

    y = jnp.dot(g.astype(cdt), wout_ref[...], preferred_element_type=jnp.float32)
    y = y + bout_ref[...].astype(jnp.float32)
    o_ref[0] = y.astype(o_ref.dtype)


# ---------------------------------------------------------------------------
# Wrapper helpers
# ---------------------------------------------------------------------------
def _tpu_vmem_capacity_bytes():
    """Physical VMEM per core (128 MiB v5e/v6e, 64 MiB v7x); safe fallback."""
    try:
        info = pltpu.get_tpu_info()
        cap = getattr(info, "vmem_capacity_bytes", None)
        if cap:
            return int(cap)
    except Exception:
        pass
    return 128 * 1024 * 1024


def _pick_tile(n, target, itemsize):
    """Largest divisor of n that is <= target and layout-friendly for `itemsize`."""
    if n <= target:
        return n
    sublane = max(8, 32 // max(int(itemsize), 1))    # 8 (f32) / 16 (bf16) / 32 (int8)
    for align in (256, 128, sublane):                # prefer MXU-feed multiples first
        if align > target:
            continue
        t = target - (target % align)
        while t >= align:
            if n % t == 0:
                return t
            t -= align
    # TODO(synk): pad N + mask the softmax reduction for awkward H*W instead of
    # falling back to one full-N tile (a giant tile can exceed VMEM, v7x first).
    return n


def _vmem_limit(nbytes_estimate, capacity):
    ceiling = (capacity * 3) // 4        # leave headroom for Mosaic internal scratch
    return int(min(max(int(nbytes_estimate * 1.5), 16 * 1024 * 1024), ceiling))


# ---------------------------------------------------------------------------
# Wrapper
# ---------------------------------------------------------------------------
def linear_attention(fmap, params, *, heads, dim_head, seq_tile=None):
    B, dim, H, W = fmap.shape
    N = H * W
    inner = heads * dim_head
    scale = dim_head ** -0.5
    dt = fmap.dtype
    isz = jnp.dtype(dt).itemsize
    f32 = 4

    vmem_cap = _tpu_vmem_capacity_bytes()
    if seq_tile is None:
        # v5e/v6e (128 MiB VMEM): bigger N tiles amortize the ~0.35 us/step overhead;
        # v7x (64 MiB): keep 512 to stay inside the budget.
        seq_tile = 1024 if vmem_cap >= 100 * 1024 * 1024 else 512

    # NCHW -> NHWC once; the 3x3 depthwise conv runs in NHWC so its output is born
    # channel-last (one fewer HBM transpose pass).
    x_nhwc = jnp.transpose(fmap, (0, 2, 3, 1))                         # (B, H, W, dim)
    w_dw_hwio = jnp.transpose(params["w_dw"], (2, 3, 1, 0))            # (3, 3, 1, dim)
    dw_nhwc = lax.conv_general_dilated(
        x_nhwc, w_dw_hwio, window_strides=(1, 1), padding=((1, 1), (1, 1)),
        dimension_numbers=("NHWC", "HWIO", "NHWC"), feature_group_count=dim)

    x_cl = x_nhwc.reshape(B, N, dim)
    dw_cl = dw_nhwc.reshape(B, N, dim)

    # Split the packed KV weight once in the wrapper (no in-kernel lane slicing).
    w_k = params["w_kv"][:, :inner]
    w_v = params["w_kv"][:, inner:]

    tK = _pick_tile(N, seq_tile, isz)
    tQ = _pick_tile(N, seq_tile, isz)

    ctx_est = (2 * tK * dim * isz                       # dw tile (double-buffered)
               + 2 * 2 * dim * inner * isz              # w_k, w_v
               + 2 * inner * inner * isz                # ctx output block
               + (2 * inner + inner * inner) * f32      # scratch (m, l, num)
               + 4 * tK * inner * f32)                  # k, v, p, num_t temps

    # --- Pass 1: per-batch context  scale * softmax_N(k)^T @ v  ------------------
    ctx = pl.pallas_call(
        partial(_context_kernel, scale=scale),
        out_shape=jax.ShapeDtypeStruct((B, inner, inner), dt),
        grid_spec=pltpu.PrefetchScalarGridSpec(
            num_scalar_prefetch=0,
            grid=(B, N // tK),
            in_specs=[
                pl.BlockSpec((1, tK, dim), lambda b, t: (b, t, 0)),    # dw tiles
                pl.BlockSpec((dim, inner), lambda b, t: (0, 0)),       # w_k
                pl.BlockSpec((dim, inner), lambda b, t: (0, 0)),       # w_v
            ],
            out_specs=pl.BlockSpec((1, inner, inner), lambda b, t: (b, 0, 0)),
            scratch_shapes=[
                pltpu.VMEM((1, inner), jnp.float32),        # running max
                pltpu.VMEM((1, inner), jnp.float32),        # running denom
                pltpu.VMEM((inner, inner), jnp.float32),    # running numerator (E, C)
            ]),
        compiler_params=pltpu.CompilerParams(
            dimension_semantics=("parallel", "arbitrary"),
            vmem_limit_bytes=_vmem_limit(ctx_est, vmem_cap)),
    )(dw_cl, w_k, w_v)

    # Block-diagonal mask / ones (hoisted out of the kernels) and the fused RHS
    # [ctx * mask | ones_bd] so pass 2 produces num and den from ONE MXU matmul.
    # Tiny (B, inner, 2*inner) XLA op, negligible next to the B*N*dim streams.
    hh = jnp.arange(inner, dtype=jnp.int32) // dim_head
    bd = (hh[:, None] == hh[None, :]).astype(dt)                       # (inner, inner)
    ctx_fused = jnp.concatenate(
        [ctx * bd[None], jnp.broadcast_to(bd[None], (B, inner, inner))], axis=-1)

    out_est = (2 * tQ * dim * isz                       # x tile
               + 2 * tQ * dim * isz                     # out tile
               + 2 * inner * 2 * inner * isz            # fused ctx block
               + 2 * (dim * inner + inner * dim + dim) * isz
               + 8 * tQ * inner * f32)                  # q, e, res, attn, gelu temps

    # --- Pass 2: streamed q path --------------------------------------------------
    out_cl = pl.pallas_call(
        partial(_output_kernel, inner=inner),
        out_shape=jax.ShapeDtypeStruct((B, N, dim), dt),
        grid_spec=pltpu.PrefetchScalarGridSpec(
            num_scalar_prefetch=0,
            grid=(B, N // tQ),
            in_specs=[
                pl.BlockSpec((1, tQ, dim), lambda b, t: (b, t, 0)),           # fmap tiles
                pl.BlockSpec((1, inner, 2 * inner), lambda b, t: (b, 0, 0)),  # fused ctx
                pl.BlockSpec((dim, inner), lambda b, t: (0, 0)),              # w_q
                pl.BlockSpec((inner, dim), lambda b, t: (0, 0)),              # w_out
                pl.BlockSpec((1, dim), lambda b, t: (0, 0)),                  # b_out
            ],
            out_specs=pl.BlockSpec((1, tQ, dim), lambda b, t: (b, t, 0)),
        ),
        compiler_params=pltpu.CompilerParams(
            dimension_semantics=("parallel", "parallel"),
            vmem_limit_bytes=_vmem_limit(out_est, vmem_cap)),
    )(x_cl, ctx_fused, params["w_q"], params["w_out"], params["b_out"])

    # (B, HW, C) -> NCHW (PermuteToFrom's trailing permute)
    return jnp.transpose(out_cl.reshape(B, H, W, dim), (0, 3, 1, 2))


# ---------------------------------------------------------------------------
# Pure-JAX reference mirroring the PyTorch forward (for validation).
# ---------------------------------------------------------------------------
def linear_attention_ref(fmap, params, *, heads, dim_head):
    B, dim, H, W = fmap.shape
    N = H * W
    inner = heads * dim_head
    scale = dim_head ** -0.5
    dw = lax.conv_general_dilated(
        fmap, params["w_dw"], (1, 1), ((1, 1), (1, 1)),
        dimension_numbers=("NCHW", "OIHW", "NCHW"), feature_group_count=dim)
    x = jnp.transpose(fmap, (0, 2, 3, 1)).reshape(B, N, dim)
    d = jnp.transpose(dw, (0, 2, 3, 1)).reshape(B, N, dim)
    q = x @ params["w_q"]
    kv = d @ params["w_kv"]
    k, v = kv[..., :inner], kv[..., inner:]
    def split_heads(t):
        return jnp.transpose(t.reshape(B, N, heads, dim_head), (0, 2, 1, 3))
    q, k, v = map(split_heads, (q, k, v))
    q = jax.nn.softmax(q, axis=-1) * scale
    k = jax.nn.softmax(k, axis=-2)
    ctx = jnp.einsum("bhnd,bhne->bhde", k, v)
    out = jnp.einsum("bhnd,bhde->bhne", q, ctx)
    out = jnp.transpose(out, (0, 2, 1, 3)).reshape(B, N, inner)
    out = jax.nn.gelu(out, approximate=False)          # nn.GELU() default (exact erf)
    out = out @ params["w_out"] + params["b_out"]
    return jnp.transpose(out.reshape(B, H, W, dim), (0, 3, 1, 2))


if __name__ == "__main__":
    key = jax.random.PRNGKey(0)
    B, dim, H, W = 2, 4, 16, 16
    heads, dim_head = 2, 8
    inner = heads * dim_head

    ks = jax.random.split(key, 6)
    fmap = jax.random.normal(ks[0], (B, dim, H, W), jnp.float32)
    params = {
        "w_dw": jax.random.normal(ks[1], (dim, 1, 3, 3), jnp.float32) / 3.0,
        "w_q": jax.random.normal(ks[2], (dim, inner), jnp.float32) * dim ** -0.5,
        "w_kv": jax.random.normal(ks[3], (dim, 2 * inner), jnp.float32) * dim ** -0.5,
        "w_out": jax.random.normal(ks[4], (inner, dim), jnp.float32) * inner ** -0.5,
        "b_out": jax.random.normal(ks[5], (1, dim), jnp.float32) * 0.01,
    }

    out = linear_attention(fmap, params, heads=heads, dim_head=dim_head)
    out = jax.block_until_ready(out)

    ref = linear_attention_ref(fmap, params, heads=heads, dim_head=dim_head)
    assert out.shape == (B, dim, H, W)
    assert jnp.allclose(out, ref, rtol=1e-2, atol=1e-2), "mismatch vs JAX reference"

    print("KERNEL_OK")
</pallas_src>

<mosaic_0001>
module attributes {stable_mosaic.version = 11 : i64} {
  func.func @_context_kernel(%arg0: i32, %arg1: i32, %arg2: memref<1x256x4xf32, #tpu.memory_space<vmem>>, %arg3: memref<4x16xf32, #tpu.memory_space<vmem>>, %arg4: memref<4x16xf32, #tpu.memory_space<vmem>>, %arg5: memref<1x16x16xf32, #tpu.memory_space<vmem>>, %arg6: memref<1x16xf32, #tpu.memory_space<vmem>>, %arg7: memref<1x16xf32, #tpu.memory_space<vmem>>, %arg8: memref<16x16xf32, #tpu.memory_space<vmem>>) attributes {dimension_semantics = [#tpu.dimension_semantics<parallel>, #tpu.dimension_semantics<arbitrary>], iteration_bounds = array<i64: 2, 1>, scalar_prefetch = 0 : i64, scratch_operands = 3 : i64, tpu.core_type = #tpu.core_type<tc>, window_params = [{transform_indices = @transform_0, window_bounds = array<i64: 1, 256, 4>}, {pipeline_mode = #tpu.pipeline_mode<synchronous>, transform_indices = @transform_1, window_bounds = array<i64: 4, 16>}, {pipeline_mode = #tpu.pipeline_mode<synchronous>, transform_indices = @transform_2, window_bounds = array<i64: 4, 16>}, {transform_indices = @transform_3, window_bounds = array<i64: 1, 16, 16>}]} {
    %c0_i32 = arith.constant 0 : i32
    %0 = arith.cmpi eq, %arg1, %c0_i32 : i32
    %1 = arith.extui %0 : i1 to i32
    %c0_i32_0 = arith.constant 0 : i32
    %2 = arith.cmpi ne, %1, %c0_i32_0 : i32
    scf.if %2 {
      %cst_25 = arith.constant 0xFF800000 : f32
      %34 = vector.broadcast %cst_25 : f32 to vector<1x16xf32>
      %c0_26 = arith.constant 0 : index
      %c0_27 = arith.constant 0 : index
      %35 = vector.load %arg6[%c0_26, %c0_27] : memref<1x16xf32, #tpu.memory_space<vmem>>, vector<1x16xf32>
      tpu.vector_store %arg6[%c0_26, %c0_27], %34 {strides = array<i32>} : memref<1x16xf32, #tpu.memory_space<vmem>>, vector<1x16xf32>,
      %cst_28 = arith.constant 0.000000e+00 : f32
      %36 = vector.broadcast %cst_28 : f32 to vector<1x16xf32>
      %c0_29 = arith.constant 0 : index
      %c0_30 = arith.constant 0 : index
      %37 = vector.load %arg7[%c0_29, %c0_30] : memref<1x16xf32, #tpu.memory_space<vmem>>, vector<1x16xf32>
      tpu.vector_store %arg7[%c0_29, %c0_30], %36 {strides = array<i32>} : memref<1x16xf32, #tpu.memory_space<vmem>>, vector<1x16xf32>,
      %cst_31 = arith.constant 0.000000e+00 : f32
      %38 = vector.broadcast %cst_31 : f32 to vector<16x16xf32>
      %c0_32 = arith.constant 0 : index
      %c0_33 = arith.constant 0 : index
      %39 = vector.load %arg8[%c0_32, %c0_33] : memref<16x16xf32, #tpu.memory_space<vmem>>, vector<16x16xf32>
      tpu.vector_store %arg8[%c0_32, %c0_33], %38 {strides = array<i32>} : memref<16x16xf32, #tpu.memory_space<vmem>>, vector<16x16xf32>,
    } else {
    }
    %c0 = arith.constant 0 : index
    %c0_1 = arith.constant 0 : index
    %c0_2 = arith.constant 0 : index
    %3 = vector.load %arg2[%c0, %c0_1, %c0_2] : memref<1x256x4xf32, #tpu.memory_space<vmem>>, vector<1x256x4xf32>
    %4 = vector.shape_cast %3 : vector<1x256x4xf32> to vector<256x4xf32>
    %c0_3 = arith.constant 0 : index
    %c0_4 = arith.constant 0 : index
    %5 = vector.load %arg3[%c0_3, %c0_4] : memref<4x16xf32, #tpu.memory_space<vmem>>, vector<4x16xf32>
    %cst = arith.constant dense<0.000000e+00> : vector<256x16xf32>
    %6 = tpu.matmul %4, %5, %cst {dimension_numbers = #tpu.dot_dimension_numbers<[1], [0], [0], [1], [0, 0, 1, 1], [], []>} : vector<256x4xf32>, vector<4x16xf32>, vector<256x16xf32> -> vector<256x16xf32>
    %c0_5 = arith.constant 0 : index
    %c0_6 = arith.constant 0 : index
    %7 = vector.load %arg4[%c0_5, %c0_6] : memref<4x16xf32, #tpu.memory_space<vmem>>, vector<4x16xf32>
    %cst_7 = arith.constant dense<0.000000e+00> : vector<256x16xf32>
    %8 = tpu.matmul %4, %7, %cst_7 {dimension_numbers = #tpu.dot_dimension_numbers<[1], [0], [0], [1], [0, 0, 1, 1], [], []>} : vector<256x4xf32>, vector<4x16xf32>, vector<256x16xf32> -> vector<256x16xf32>
    %c0_8 = arith.constant 0 : index
    %c0_9 = arith.constant 0 : index
    %9 = vector.load %arg6[%c0_8, %c0_9] : memref<1x16xf32, #tpu.memory_space<vmem>>, vector<1x16xf32>
    %cst_10 = arith.constant dense<0xFF800000> : vector<16xf32>
    %10 = vector.multi_reduction <maximumf>, %6, %cst_10 [0] : vector<256x16xf32> to vector<16xf32>
    %11 = vector.shape_cast %10 : vector<16xf32> to vector<1x16xf32>
    %12 = arith.maximumf %9, %11 : vector<1x16xf32>
    %13 = arith.subf %9, %12 : vector<1x16xf32>
    %14 = math.exp %13 : vector<1x16xf32>
    %15 = vector.broadcast %12 : vector<1x16xf32> to vector<256x16xf32>
    %16 = arith.subf %6, %15 : vector<256x16xf32>
    %17 = math.exp %16 : vector<256x16xf32>
    %c0_11 = arith.constant 0 : index
    %c0_12 = arith.constant 0 : index
    %18 = vector.load %arg7[%c0_11, %c0_12] : memref<1x16xf32, #tpu.memory_space<vmem>>, vector<1x16xf32>
    %19 = arith.mulf %14, %18 : vector<1x16xf32>
    %cst_13 = arith.constant dense<0.000000e+00> : vector<16xf32>
    %20 = vector.multi_reduction <add>, %17, %cst_13 [0] : vector<256x16xf32> to vector<16xf32>
    %21 = vector.shape_cast %20 : vector<16xf32> to vector<1x16xf32>
    %22 = arith.addf %19, %21 : vector<1x16xf32>
    %c0_14 = arith.constant 0 : index
    %c0_15 = arith.constant 0 : index
    %23 = vector.load %arg7[%c0_14, %c0_15] : memref<1x16xf32, #tpu.memory_space<vmem>>, vector<1x16xf32>
    tpu.vector_store %arg7[%c0_14, %c0_15], %22 {strides = array<i32>} : memref<1x16xf32, #tpu.memory_space<vmem>>, vector<1x16xf32>,
    %cst_16 = arith.constant dense<0.000000e+00> : vector<16x16xf32>
    %24 = tpu.matmul %8, %17, %cst_16 {dimension_numbers = #tpu.dot_dimension_numbers<[0], [0], [1], [1], [0, 1, 1, 1], [], []>} : vector<256x16xf32>, vector<256x16xf32>, vector<16x16xf32> -> vector<16x16xf32>
    %c0_17 = arith.constant 0 : index
    %c0_18 = arith.constant 0 : index
    %25 = vector.load %arg8[%c0_17, %c0_18] : memref<16x16xf32, #tpu.memory_space<vmem>>, vector<16x16xf32>
    %26 = vector.broadcast %14 : vector<1x16xf32> to vector<16x16xf32>
    %27 = arith.mulf %26, %25 : vector<16x16xf32>
    %28 = arith.addf %27, %24 : vector<16x16xf32>
    %c0_19 = arith.constant 0 : index
    %c0_20 = arith.constant 0 : index
    %29 = vector.load %arg8[%c0_19, %c0_20] : memref<16x16xf32, #tpu.memory_space<vmem>>, vector<16x16xf32>
    tpu.vector_store %arg8[%c0_19, %c0_20], %28 {strides = array<i32>} : memref<16x16xf32, #tpu.memory_space<vmem>>, vector<16x16xf32>,
    %c0_21 = arith.constant 0 : index
    %c0_22 = arith.constant 0 : index
    %30 = vector.load %arg6[%c0_21, %c0_22] : memref<1x16xf32, #tpu.memory_space<vmem>>, vector<1x16xf32>
    tpu.vector_store %arg6[%c0_21, %c0_22], %12 {strides = array<i32>} : memref<1x16xf32, #tpu.memory_space<vmem>>, vector<1x16xf32>,
    %c0_i32_23 = arith.constant 0 : i32
    %31 = arith.cmpi eq, %arg1, %c0_i32_23 : i32
    %32 = arith.extui %31 : i1 to i32
    %c0_i32_24 = arith.constant 0 : i32
    %33 = arith.cmpi ne, %32, %c0_i32_24 : i32
    scf.if %33 {
      %c0_25 = arith.constant 0 : index
      %c0_26 = arith.constant 0 : index
      %34 = vector.load %arg7[%c0_25, %c0_26] : memref<1x16xf32, #tpu.memory_space<vmem>>, vector<1x16xf32>
      %cst_27 = arith.constant 0.353553385 : f32
      %35 = vector.broadcast %cst_27 : f32 to vector<1x16xf32>
      %36 = arith.divf %35, %34 : vector<1x16xf32>
      %c0_28 = arith.constant 0 : index
      %c0_29 = arith.constant 0 : index
      %37 = vector.load %arg8[%c0_28, %c0_29] : memref<16x16xf32, #tpu.memory_space<vmem>>, vector<16x16xf32>
      %38 = vector.broadcast %36 : vector<1x16xf32> to vector<16x16xf32>
      %39 = arith.mulf %37, %38 : vector<16x16xf32>
      %40 = tpu.transpose %39, [1, 0] : vector<16x16xf32> -> vector<16x16xf32>
      %c0_30 = arith.constant 0 : index
      %c0_31 = arith.constant 0 : index
      %c0_32 = arith.constant 0 : index
      %41 = vector.load %arg5[%c0_30, %c0_31, %c0_32] : memref<1x16x16xf32, #tpu.memory_space<vmem>>, vector<1x16x16xf32>
      %42 = vector.shape_cast %41 : vector<1x16x16xf32> to vector<16x16xf32>
      %43 = vector.shape_cast %40 : vector<16x16xf32> to vector<1x16x16xf32>
      tpu.vector_store %arg5[%c0_30, %c0_31, %c0_32], %43 {strides = array<i32>} : memref<1x16x16xf32, #tpu.memory_space<vmem>>, vector<1x16x16xf32>,
    } else {
    }
    return
  }
  func.func @transform_0(%arg0: i32, %arg1: i32) -> (i32, i32, i32) {
    %c0_i32 = arith.constant 0 : i32
    %c0_i32_0 = arith.constant 0 : i32
    return %arg0, %arg1, %c0_i32 : i32, i32, i32
  }
  func.func @transform_1(%arg0: i32, %arg1: i32) -> (i32, i32) {
    %c0_i32 = arith.constant 0 : i32
    %c0_i32_0 = arith.constant 0 : i32
    %c0_i32_1 = arith.constant 0 : i32
    return %c0_i32, %c0_i32_0 : i32, i32
  }
  func.func @transform_2(%arg0: i32, %arg1: i32) -> (i32, i32) {
    %c0_i32 = arith.constant 0 : i32
    %c0_i32_0 = arith.constant 0 : i32
    %c0_i32_1 = arith.constant 0 : i32
    return %c0_i32, %c0_i32_0 : i32, i32
  }
  func.func @transform_3(%arg0: i32, %arg1: i32) -> (i32, i32, i32) {
    %c0_i32 = arith.constant 0 : i32
    %c0_i32_0 = arith.constant 0 : i32
    %c0_i32_1 = arith.constant 0 : i32
    return %arg0, %c0_i32, %c0_i32_0 : i32, i32, i32
  }
}

</mosaic_0001>

<llo_original>
// kernel: tpu_custom_call.1
$region0: #{tpu_custom_call.1}
  #allocation0 [shape = 'u32[]', space=smem, size = 0x4, offset = 0x4, fixed_abs, tag = 'smem constant byte address 0x4 - core index']
  #allocation1 [shape = 'u32[144,128]{1,0:T(1,128)}', space=vmem, size = 0x12000, scoped, tag = 'internal scratch']
  #allocation2 [shape = 'f32[1,16]{1,0:T(1,128)}', space=vmem, size = 0x200, scoped, tag = 'scratch operand']
  #allocation3 [shape = 'f32[1,16]{1,0:T(1,128)}', space=vmem, size = 0x200, scoped, tag = 'scratch operand']
  #allocation4 [shape = 'f32[16,16]{1,0:T(8,128)}', space=vmem, size = 0x2000, scoped, tag = 'scratch operand']
  %s0 = inlined_call_operand.vmem [shape: f32[2,256,4], index: 0, kind: input, shape index: {}]
  %s1 = inlined_call_operand.vmem [shape: f32[4,16], index: 1, kind: input, shape index: {}]
  %s2 = inlined_call_operand.vmem [shape: f32[4,16], index: 2, kind: input, shape index: {}]
  %s3 = inlined_call_operand.hbm [shape: f32[2,16,16], index: 3, kind: output, shape index: {}]
  %s4 = sld [smem:[#allocation0]]
  $region53: #{tpu_custom_call.1} parent=0
    _
  %s6 = ssub.s32 1, %s4
  %s7 = scalar_select 0, %s6, %s4
  $region1: #{tpu_custom_call.1} parent=0
    #allocation5 [shape = 'u8[16384]{0}', space=vmem, size = 0x4000, scoped, tag = 'output window, operand 0']
    #allocation6 [shape = 's32[2]{0}', space=sflag, size = 0x8, scoped, tag = 'scoped memory for tpu_custom_call.1']
    %8 = vsyncpa [#allocation6], 0
    %s9 = scalar_lea.sflag [#allocation6], 1
    %10 = vsyncpa %s9, 0
    loop: start=0, step=1, limit=4
    $region2: #{tpu_custom_call.1} parent=1 // loop_pre_header
      _
    $region3: #{tpu_custom_call.1} parent=1 // loop_header
      %s12 = sphi 0, %s16
      %p13 = scmp.ge.s32.totalorder %s12, 4
      %s19 = sphi 0, %s31
      %s20 = sphi 0, %s27
      %s21 = sphi 0, %s19
      %s22 = sphi 0, %s20
      %s23 = sphi 0, %s21
      %s24 = sphi 0, %s22
      %s36 = sphi 0, %s38
      %s39 = sphi 0, %s36
      %s40 = sphi 0, %s39
      %s56 = sphi 0, %s40
      %s60 = sphi 0, %s60
      %s62 = sphi 0, %s60
      %s63 = sphi 0, %s62
      %s77 = sphi 0, %s63
      %s81 = sphi 0, %s81
      %s83 = sphi 0, %s81
      %s84 = sphi 0, %s83
      %s98 = sphi 0, %s84
      %s104 = sphi 0, %s106
      %s107 = sphi 0, %s104
      %s108 = sphi 0, %s107
      %s124 = sphi 0, %s108
    $region4: #{tpu_custom_call.1} parent=1 // loop_header_branch
      %15 = sbr.rel (%p13) target = $region8
    $region5: #{tpu_custom_call.1} parent=1 // loop_body
      %s17 = ssub.s32 %s12, 1
      %s18 = ssub.s32 %s12, 2
      %s25 = sadd.s32 1, %s20
      %p26 = scmp.ge.s32.totalorder %s25, 1
      %s27 = scalar_select %p26, 0, %s25
      %s28 = sadd.s32 1, %s19
      %s29 = scalar_select %p26, %s28, %s19
      %p30 = scmp.ge.s32.totalorder %s29, 2
      %s31 = scalar_select %p30, 0, %s29
      %s32 = ssub.s32 %s19, %s31
      %s33 = ssub.s32 %s20, %s27
      %s34 = sor.u32 %s32, %s33
      %p35 = scmp.eq.s32.totalorder %s34, 0
      %s37 = sadd.s32 %s36, 1
      %s38 = scalar_select %p35, %s36, %s37
      %p41 = pneg %p35
      %p42 = scmp.eq.s32.totalorder %s12, 1
      %p43 = por %p41, %p42
      %p44 = scmp.ne.s32.totalorder %s36, %s39
      %p45 = scmp.eq.s32.totalorder %s12, 0
      %p46 = por %p44, %p45
      %p47 = scmp.ne.s32.totalorder %s36, %s39
      %p48 = scmp.eq.s32.totalorder %s17, 1
      %p49 = por %p47, %p48
      %p50 = scmp.ne.s32.totalorder %s39, %s40
      %p51 = scmp.eq.s32.totalorder %s17, 0
      %p52 = por %p50, %p51
      %p53 = scmp.ne.s32.totalorder %s39, %s40
      %p54 = scmp.eq.s32.totalorder %s18, 1
      %p55 = por %p53, %p54
      %p57 = scmp.ne.s32.totalorder %s40, %s56
      %p58 = scmp.eq.s32.totalorder %s18, 0
      %p59 = por %p57, %p58
      %s61 = sadd.s32 %s60, 1
      %p64 = scmp.eq.s32.totalorder %s12, 1
      %p65 = scmp.ne.s32.totalorder %s60, %s62
      %p66 = scmp.eq.s32.totalorder %s12, 0
      %p67 = por %p65, %p66
      %p68 = scmp.ne.s32.totalorder %s60, %s62
      %p69 = scmp.eq.s32.totalorder %s17, 1
      %p70 = por %p68, %p69
      %p71 = scmp.ne.s32.totalorder %s62, %s63
      %p72 = scmp.eq.s32.totalorder %s17, 0
      %p73 = por %p71, %p72
      %p74 = scmp.ne.s32.totalorder %s62, %s63
      %p75 = scmp.eq.s32.totalorder %s18, 1
      %p76 = por %p74, %p75
      %p78 = scmp.ne.s32.totalorder %s63, %s77
      %p79 = scmp.eq.s32.totalorder %s18, 0
      %p80 = por %p78, %p79
      %s82 = sadd.s32 %s81, 1
      %p85 = scmp.eq.s32.totalorder %s12, 1
      %p86 = scmp.ne.s32.totalorder %s81, %s83
      %p87 = scmp.eq.s32.totalorder %s12, 0
      %p88 = por %p86, %p87
      %p89 = scmp.ne.s32.totalorder %s81, %s83
      %p90 = scmp.eq.s32.totalorder %s17, 1
      %p91 = por %p89, %p90
      %p92 = scmp.ne.s32.totalorder %s83, %s84
      %p93 = scmp.eq.s32.totalorder %s17, 0
      %p94 = por %p92, %p93
      %p95 = scmp.ne.s32.totalorder %s83, %s84
      %p96 = scmp.eq.s32.totalorder %s18, 1
      %p97 = por %p95, %p96
      %p99 = scmp.ne.s32.totalorder %s84, %s98
      %p100 = scmp.eq.s32.totalorder %s18, 0
      %p101 = por %p99, %p100
      %s102 = ssub.s32 %s19, %s31
      %p103 = scmp.eq.s32.totalorder %s102, 0
      %s105 = sadd.s32 %s104, 1
      %s106 = scalar_select %p103, %s104, %s105
      %p109 = pneg %p103
      %p110 = scmp.eq.s32.totalorder %s12, 1
      %p111 = por %p109, %p110
      %p112 = scmp.ne.s32.totalorder %s104, %s107
      %p113 = scmp.eq.s32.totalorder %s12, 0
      %p114 = por %p112, %p113
      %p115 = scmp.ne.s32.totalorder %s104, %s107
      %p116 = scmp.eq.s32.totalorder %s17, 1
      %p117 = por %p115, %p116
      %p118 = scmp.ne.s32.totalorder %s107, %s108
      %p119 = scmp.eq.s32.totalorder %s17, 0
      %p120 = por %p118, %p119
      %p121 = scmp.ne.s32.totalorder %s107, %s108
      %p122 = scmp.eq.s32.totalorder %s18, 1
      %p123 = por %p121, %p122
      %p125 = scmp.ne.s32.totalorder %s108, %s124
      %p126 = scmp.eq.s32.totalorder %s18, 0
      %p127 = por %p125, %p126
      %p128 = scmp.le.s32.totalorder 1, %s12
      %p129 = scmp.lt.s32.totalorder %s12, 3
      %p130 = pnand %p128, %p129
      %p131 = pneg %p130
      // Predicated region
      $region9: #{tpu_custom_call.1} parent=5 // pred_check
        _
      $region10: #{tpu_custom_call.1} parent=5 // pred_check_branch
        %133 = sbr.rel (%p130) target = $region12
      $region11: #{tpu_custom_call.1} parent=5 // pred_region
        %s134 = ssub.s32 %s12, 1
        // Predicated region
        $region13: #{tpu_custom_call.1} parent=11 // pred_check
          %p135 = pneg %p73
        $region14: #{tpu_custom_call.1} parent=11 // pred_check_branch
          %137 = sbr.rel (%p135) target = $region16
        $region15: #{tpu_custom_call.1} parent=11 // pred_region
          _
        $region16: #{tpu_custom_call.1} parent=11 // pred_fallthru
          _
        // Predicated region
        $region17: #{tpu_custom_call.1} parent=11 // pred_check
          %p138 = pneg %p94
        $region18: #{tpu_custom_call.1} parent=11 // pred_check_branch
          %140 = sbr.rel (%p138) target = $region20
        $region19: #{tpu_custom_call.1} parent=11 // pred_region
          _
        $region20: #{tpu_custom_call.1} parent=11 // pred_fallthru
          _
      $region12: #{tpu_custom_call.1} parent=5 // pred_fallthru
        _
      %p141 = scmp.lt.s32.totalorder %s12, 2
      // Predicated region
      $region21: #{tpu_custom_call.1} parent=5 // pred_check
        %p142 = pneg %p141
      $region22: #{tpu_custom_call.1} parent=5 // pred_check_branch
        %144 = sbr.rel (%p142) target = $region24
      $region23: #{tpu_custom_call.1} parent=5 // pred_region
        // Predicated region
        $region25: #{tpu_custom_call.1} parent=23 // pred_check
          %p145 = pneg %p46
        $region26: #{tpu_custom_call.1} parent=23 // pred_check_branch
          %147 = sbr.rel (%p145) target = $region28
        $region27: #{tpu_custom_call.1} parent=23 // pred_region
          %s148 = smul.u32 32, %s20
          %p149 = scmp.lt.s32.totalorder %s19, 1
          %s150 = scalar_select %p149, %s19, 1
          %p151 = scmp.lt.s32.totalorder %s148, 31
          %s152 = scalar_select %p151, %s148, 31
          %s153 = smul.addr %s150, 32
          %s154 = sadd.s32 %s152, %s153
          %s155 = smul.addr %s154, 8
          %s156 = scalar_lea.vmem %s0, %s155
          %s157 = smul.u32 32, %s20
        $region28: #{tpu_custom_call.1} parent=23 // pred_fallthru
          _
      $region24: #{tpu_custom_call.1} parent=5 // pred_fallthru
        _
      %p158 = scmp.le.s32.totalorder 1, %s12
      %p159 = scmp.lt.s32.totalorder %s12, 3
      %p160 = pnand %p158, %p159
      %p161 = pneg %p160
      // Predicated region
      $region29: #{tpu_custom_call.1} parent=5 // pred_check
        _
      $region30: #{tpu_custom_call.1} parent=5 // pred_check_branch
        %163 = sbr.rel (%p160) target = $region32
      $region31: #{tpu_custom_call.1} parent=5 // pred_region
        %s164 = ssub.s32 %s12, 1
        %s165 = smul.u32 32, %s22
        %p166 = scmp.lt.s32.totalorder %s21, 1
        %s167 = scalar_select %p166, %s21, 1
        %p168 = scmp.lt.s32.totalorder %s165, 31
        %s169 = scalar_select %p168, %s165, 31
        %s170 = smul.addr %s167, 32
        %s171 = sadd.s32 %s169, %s170
        %s172 = smul.addr %s171, 8
        %s173 = scalar_lea.vmem %s0, %s172
        %p174 = pneg %p52
        %p175 = pneg %p49
        %p176 = pneg %p73
        %p177 = pneg %p70
        %p178 = pneg %p94
        %p179 = pneg %p91
        %p180 = pneg %p120
        %p181 = pneg %p117
        %s182 = sand.u32 %s107, 1
        %s183 = scalar_lea.sflag [#allocation6], %s182
        %s184 = sand.u32 %s107, 1
        %s185 = smul.addr %s184, 16
        %s186 = scalar_lea.vmem [#allocation5], %s185
        %s187 = smul.u32 32, %s22
        %p188 = scmp.lt.s32.totalorder %s21, 1
        %s189 = scalar_select %p188, %s21, 1
        %p190 = scmp.lt.s32.totalorder %s187, 31
        %s191 = scalar_select %p190, %s187, 31
        %s192 = smul.addr %s189, 32
        %s193 = sadd.s32 %s191, %s192
        %s194 = smul.addr %s193, 8
        %s195 = scalar_lea.vmem %s0, %s194
        %s196 = smul.u32 32, %s22
        %p197 = scmp.eq.s32.totalorder %s22, 0
        // Predicated region
        $region33: #{tpu_custom_call.1} parent=31 // pred_check
          %p198 = pneg %p197
        $region34: #{tpu_custom_call.1} parent=31 // pred_check_branch
          %200 = sbr.rel (%p198) target = $region36
        $region35: #{tpu_custom_call.1} parent=31 // pred_region
          %vm201 = vcmask 122880
          %202 = vst.msk [vmem:[#allocation2] sm:$0x1] %vm201, -inf
          %203 = vst.msk [vmem:[#allocation3] sm:$0x1] %vm201, 0.0
          %vm204 = vcmask 130048
          %205 = vst.msk [vmem:[#allocation4] sm:$0xff] %vm204, 0.0
          %206 = vst.msk [vmem:[#allocation4 + $0x8] sm:$0xff] %vm204, 0.0
        $region36: #{tpu_custom_call.1} parent=31 // pred_fallthru
          _
        %v207 = vld [vmem:[%s195] sm:$0xff]
        %v208 = vld [vmem:[%s195 + $0x8] sm:$0xff]
        %v209 = vld [vmem:[%s195 + $0x10] sm:$0xff]
        %v210 = vld [vmem:[%s195 + $0x18] sm:$0xff]
        %v211 = vld [vmem:[%s195 + $0x20] sm:$0xff]
        %v212 = vld [vmem:[%s195 + $0x28] sm:$0xff]
        %v213 = vld [vmem:[%s195 + $0x30] sm:$0xff]
        %v214 = vld [vmem:[%s195 + $0x38] sm:$0xff]
        %v215 = vld [vmem:[%s195 + $0x40] sm:$0xff]
        %v216 = vld [vmem:[%s195 + $0x48] sm:$0xff]
        %v217 = vld [vmem:[%s195 + $0x50] sm:$0xff]
        %v218 = vld [vmem:[%s195 + $0x58] sm:$0xff]
        %v219 = vld [vmem:[%s195 + $0x60] sm:$0xff]
        %v220 = vld [vmem:[%s195 + $0x68] sm:$0xff]
        %v221 = vld [vmem:[%s195 + $0x70] sm:$0xff]
        %v222 = vld [vmem:[%s195 + $0x78] sm:$0xff]
        %v223 = vld [vmem:[%s195 + $0x80] sm:$0xff]
        %v224 = vld [vmem:[%s195 + $0x88] sm:$0xff]
        %v225 = vld [vmem:[%s195 + $0x90] sm:$0xff]
        %v226 = vld [vmem:[%s195 + $0x98] sm:$0xff]
        %v227 = vld [vmem:[%s195 + $0xa0] sm:$0xff]
        %v228 = vld [vmem:[%s195 + $0xa8] sm:$0xff]
        %v229 = vld [vmem:[%s195 + $0xb0] sm:$0xff]
        %v230 = vld [vmem:[%s195 + $0xb8] sm:$0xff]
        %v231 = vld [vmem:[%s195 + $0xc0] sm:$0xff]
        %v232 = vld [vmem:[%s195 + $0xc8] sm:$0xff]
        %v233 = vld [vmem:[%s195 + $0xd0] sm:$0xff]
        %v234 = vld [vmem:[%s195 + $0xd8] sm:$0xff]
        %v235 = vld [vmem:[%s195 + $0xe0] sm:$0xff]
        %v236 = vld [vmem:[%s195 + $0xe8] sm:$0xff]
        %v237 = vld [vmem:[%s195 + $0xf0] sm:$0xff]
        %v238 = vld [vmem:[%s195 + $0xf8] sm:$0xff]
        %v239 = vld [vmem:[%s1] sm:$0xf]
        %vm240 = vcmask 31744
        %v242 = vsel %vm240, %v207, 0
        %v245 = vsel %vm240, %v208, 0
        %v248 = vsel %vm240, %v209, 0
        %v251 = vsel %vm240, %v210, 0
        %v254 = vsel %vm240, %v211, 0
        %v257 = vsel %vm240, %v212, 0
        %v260 = vsel %vm240, %v213, 0
        %v263 = vsel %vm240, %v214, 0
        %v266 = vsel %vm240, %v215, 0
        %v269 = vsel %vm240, %v216, 0
        %v272 = vsel %vm240, %v217, 0
        %v275 = vsel %vm240, %v218, 0
        %v278 = vsel %vm240, %v219, 0
        %v281 = vsel %vm240, %v220, 0
        %v284 = vsel %vm240, %v221, 0
        %v287 = vsel %vm240, %v222, 0
        %v290 = vsel %vm240, %v223, 0
        %v293 = vsel %vm240, %v224, 0
        %v296 = vsel %vm240, %v225, 0
        %v299 = vsel %vm240, %v226, 0
        %v302 = vsel %vm240, %v227, 0
        %v305 = vsel %vm240, %v228, 0
        %v308 = vsel %vm240, %v229, 0
        %v311 = vsel %vm240, %v230, 0
        %v314 = vsel %vm240, %v231, 0
        %v317 = vsel %vm240, %v232, 0
        %v320 = vsel %vm240, %v233, 0
        %v323 = vsel %vm240, %v234, 0
        %v326 = vsel %vm240, %v235, 0
        %v329 = vsel %vm240, %v236, 0
        %v332 = vsel %vm240, %v237, 0
        %v335 = vsel %vm240, %v238, 0
        %vm337 = vcmask 1043456
        %v339 = vsel %vm337, %v239, 0
        %341 = vmatprep.subr.mxu0 0.0
        %342 = vmatpush1.msra.mxu0 0.0
        %343 = vmatprep.subr.mxu0 0.0
        %344 = vmatpush1.msra.mxu0 0.0
        %345 = vmatprep.subr.mxu0 0.0
        %346 = vmatpush1.msra.mxu0 0.0
        %347 = vmatprep.subr.mxu0 0.0
        %348 = vmatpush1.msra.mxu0 0.0
        %349 = vmatprep.subr.mxu0 0.0
        %350 = vmatpush1.msra.mxu0 0.0
        %351 = vmatprep.subr.mxu0 0.0
        %352 = vmatpush1.msra.mxu0 0.0
        %353 = vmatprep.subr.mxu0 0.0
        %354 = vmatpush1.msra.mxu0 0.0
        %355 = vmatprep.subr.mxu0 0.0
        %356 = vmatpush1.msra.mxu0 0.0
        %357 = vmatprep.subr.mxu0 0.0
        %358 = vmatpush1.msra.mxu0 0.0
        %359 = vmatprep.subr.mxu0 0.0
        %360 = vmatpush1.msra.mxu0 0.0
        %361 = vmatprep.subr.mxu0 0.0
        %362 = vmatpush1.msra.mxu0 0.0
        %363 = vmatprep.subr.mxu0 0.0
        %364 = vmatpush1.msra.mxu0 0.0
        %365 = vmatprep.subr.mxu0 0.0
        %366 = vmatpush1.msra.mxu0 0.0
        %367 = vmatprep.subr.mxu0 0.0
        %368 = vmatpush1.msra.mxu0 0.0
        %369 = vmatprep.subr.mxu0 0.0
        %370 = vmatpush1.msra.mxu0 0.0
        %371 = vmatprep.subr.mxu0 0.0
        %372 = vmatpush1.msra.mxu0 %v339
        %373 = vmatprep.subr.mxu0 0.0
        %374 = vmatpush2.msra.mxu0 0.0
        %375 = vmatprep.subr.mxu0 0.0
        %376 = vmatpush2.msra.mxu0 0.0
        %377 = vmatprep.subr.mxu0 0.0
        %378 = vmatpush2.msra.mxu0 0.0
        %379 = vmatprep.subr.mxu0 0.0
        %380 = vmatpush2.msra.mxu0 0.0
        %381 = vmatprep.subr.mxu0 0.0
        %382 = vmatpush2.msra.mxu0 0.0
        %383 = vmatprep.subr.mxu0 0.0
        %384 = vmatpush2.msra.mxu0 0.0
        %385 = vmatprep.subr.mxu0 0.0
        %386 = vmatpush2.msra.mxu0 0.0
        %387 = vmatprep.subr.mxu0 0.0
        %388 = vmatpush2.msra.mxu0 0.0
        %389 = vmatprep.subr.mxu0 0.0
        %390 = vmatpush2.msra.mxu0 0.0
        %391 = vmatprep.subr.mxu0 0.0
        %392 = vmatpush2.msra.mxu0 0.0
        %393 = vmatprep.subr.mxu0 0.0
        %394 = vmatpush2.msra.mxu0 0.0
        %395 = vmatprep.subr.mxu0 0.0
        %396 = vmatpush2.msra.mxu0 0.0
        %397 = vmatprep.subr.mxu0 0.0
        %398 = vmatpush2.msra.mxu0 0.0
        %399 = vmatprep.subr.mxu0 0.0
        %400 = vmatpush2.msra.mxu0 0.0
        %401 = vmatprep.subr.mxu0 0.0
        %402 = vmatpush2.msra.mxu0 0.0
        %403 = vmatprep.subr.mxu0 0.0
        %404 = vmatpush2.msra.mxu0 0.0
        %405 = vmatprep.mubr.f32.mxu0 0.0
        %406 = vmatmul.mubr.f32.gmra.mxu0 %v242
        %v407 = vpop.f32.mrf.mxu0
        %v408 = vadd.f32 0.0, %v407
        %v409 = vpop.f32.mrf.mxu0
        %410 = vmatprep.mubr.f32.mxu0 0.0
        %411 = vmatmul.mubr.f32.gmra.mxu0 %v245
        %v412 = vpop.f32.mrf.mxu0
        %v413 = vadd.f32 0.0, %v412
        %v414 = vpop.f32.mrf.mxu0
        %415 = vmatprep.mubr.f32.mxu0 0.0
        %416 = vmatmul.mubr.f32.gmra.mxu0 %v248
        %v417 = vpop.f32.mrf.mxu0
        %v418 = vadd.f32 0.0, %v417
        %v419 = vpop.f32.mrf.mxu0
        %420 = vmatprep.mubr.f32.mxu0 0.0
        %421 = vmatmul.mubr.f32.gmra.mxu0 %v251
        %v422 = vpop.f32.mrf.mxu0
        %v423 = vadd.f32 0.0, %v422
        %v424 = vpop.f32.mrf.mxu0
        %425 = vmatprep.mubr.f32.mxu0 0.0
        %426 = vmatmul.mubr.f32.gmra.mxu0 %v254
        %v427 = vpop.f32.mrf.mxu0
        %v428 = vadd.f32 0.0, %v427
        %v429 = vpop.f32.mrf.mxu0
        %430 = vmatprep.mubr.f32.mxu0 0.0
        %431 = vmatmul.mubr.f32.gmra.mxu0 %v257
        %v432 = vpop.f32.mrf.mxu0
        %v433 = vadd.f32 0.0, %v432
        %v434 = vpop.f32.mrf.mxu0
        %435 = vmatprep.mubr.f32.mxu0 0.0
        %436 = vmatmul.mubr.f32.gmra.mxu0 %v260
        %v437 = vpop.f32.mrf.mxu0
        %v438 = vadd.f32 0.0, %v437
        %v439 = vpop.f32.mrf.mxu0
        %440 = vmatprep.mubr.f32.mxu0 0.0
        %441 = vmatmul.mubr.f32.gmra.mxu0 %v263
        %v442 = vpop.f32.mrf.mxu0
        %v443 = vadd.f32 0.0, %v442
        %v444 = vpop.f32.mrf.mxu0
        %445 = vmatprep.mubr.f32.mxu0 0.0
        %446 = vmatmul.mubr.f32.gmra.mxu0 %v266
        %v447 = vpop.f32.mrf.mxu0
        %v448 = vadd.f32 0.0, %v447
        %v449 = vpop.f32.mrf.mxu0
        %450 = vmatprep.mubr.f32.mxu0 0.0
        %451 = vmatmul.mubr.f32.gmra.mxu0 %v269
        %v452 = vpop.f32.mrf.mxu0
        %v453 = vadd.f32 0.0, %v452
        %v454 = vpop.f32.mrf.mxu0
        %455 = vmatprep.mubr.f32.mxu0 0.0
        %456 = vmatmul.mubr.f32.gmra.mxu0 %v272
        %v457 = vpop.f32.mrf.mxu0
        %v458 = vadd.f32 0.0, %v457
        %v459 = vpop.f32.mrf.mxu0
        %460 = vmatprep.mubr.f32.mxu0 0.0
        %461 = vmatmul.mubr.f32.gmra.mxu0 %v275
        %v462 = vpop.f32.mrf.mxu0
        %v463 = vadd.f32 0.0, %v462
        %v464 = vpop.f32.mrf.mxu0
        %465 = vmatprep.mubr.f32.mxu0 0.0
        %466 = vmatmul.mubr.f32.gmra.mxu0 %v278
        %v467 = vpop.f32.mrf.mxu0
        %v468 = vadd.f32 0.0, %v467
        %v469 = vpop.f32.mrf.mxu0
        %470 = vmatprep.mubr.f32.mxu0 0.0
        %471 = vmatmul.mubr.f32.gmra.mxu0 %v281
        %v472 = vpop.f32.mrf.mxu0
        %v473 = vadd.f32 0.0, %v472
        %v474 = vpop.f32.mrf.mxu0
        %475 = vmatprep.mubr.f32.mxu0 0.0
        %476 = vmatmul.mubr.f32.gmra.mxu0 %v284
        %v477 = vpop.f32.mrf.mxu0
        %v478 = vadd.f32 0.0, %v477
        %v479 = vpop.f32.mrf.mxu0
        %480 = vmatprep.mubr.f32.mxu0 0.0
        %481 = vmatmul.mubr.f32.gmra.mxu0 %v287
        %v482 = vpop.f32.mrf.mxu0
        %v483 = vadd.f32 0.0, %v482
        %v484 = vpop.f32.mrf.mxu0
        %485 = vmatprep.mubr.f32.mxu0 0.0
        %486 = vmatmul.mubr.f32.gmra.mxu0 %v290
        %v487 = vpop.f32.mrf.mxu0
        %v488 = vadd.f32 0.0, %v487
        %v489 = vpop.f32.mrf.mxu0
        %490 = vmatprep.mubr.f32.mxu0 0.0
        %491 = vmatmul.mubr.f32.gmra.mxu0 %v293
        %v492 = vpop.f32.mrf.mxu0
        %v493 = vadd.f32 0.0, %v492
        %v494 = vpop.f32.mrf.mxu0
        %495 = vmatprep.mubr.f32.mxu0 0.0
        %496 = vmatmul.mubr.f32.gmra.mxu0 %v296
        %v497 = vpop.f32.mrf.mxu0
        %v498 = vadd.f32 0.0, %v497
        %v499 = vpop.f32.mrf.mxu0
        %500 = vmatprep.mubr.f32.mxu0 0.0
        %501 = vmatmul.mubr.f32.gmra.mxu0 %v299
        %v502 = vpop.f32.mrf.mxu0
        %v503 = vadd.f32 0.0, %v502
        %v504 = vpop.f32.mrf.mxu0
        %505 = vmatprep.mubr.f32.mxu0 0.0
        %506 = vmatmul.mubr.f32.gmra.mxu0 %v302
        %v507 = vpop.f32.mrf.mxu0
        %v508 = vadd.f32 0.0, %v507
        %v509 = vpop.f32.mrf.mxu0
        %510 = vmatprep.mubr.f32.mxu0 0.0
        %511 = vmatmul.mubr.f32.gmra.mxu0 %v305
        %v512 = vpop.f32.mrf.mxu0
        %v513 = vadd.f32 0.0, %v512
        %v514 = vpop.f32.mrf.mxu0
        %515 = vmatprep.mubr.f32.mxu0 0.0
        %516 = vmatmul.mubr.f32.gmra.mxu0 %v308
        %v517 = vpop.f32.mrf.mxu0
        %v518 = vadd.f32 0.0, %v517
        %v519 = vpop.f32.mrf.mxu0
        %520 = vmatprep.mubr.f32.mxu0 0.0
        %521 = vmatmul.mubr.f32.gmra.mxu0 %v311
        %v522 = vpop.f32.mrf.mxu0
        %v523 = vadd.f32 0.0, %v522
        %v524 = vpop.f32.mrf.mxu0
        %525 = vmatprep.mubr.f32.mxu0 0.0
        %526 = vmatmul.mubr.f32.gmra.mxu0 %v314
        %v527 = vpop.f32.mrf.mxu0
        %v528 = vadd.f32 0.0, %v527
        %v529 = vpop.f32.mrf.mxu0
        %530 = vmatprep.mubr.f32.mxu0 0.0
        %531 = vmatmul.mubr.f32.gmra.mxu0 %v317
        %v532 = vpop.f32.mrf.mxu0
        %v533 = vadd.f32 0.0, %v532
        %v534 = vpop.f32.mrf.mxu0
        %535 = vmatprep.mubr.f32.mxu0 0.0
        %536 = vmatmul.mubr.f32.gmra.mxu0 %v320
        %v537 = vpop.f32.mrf.mxu0
        %v538 = vadd.f32 0.0, %v537
        %v539 = vpop.f32.mrf.mxu0
        %540 = vmatprep.mubr.f32.mxu0 0.0
        %541 = vmatmul.mubr.f32.gmra.mxu0 %v323
        %v542 = vpop.f32.mrf.mxu0
        %v543 = vadd.f32 0.0, %v542
        %v544 = vpop.f32.mrf.mxu0
        %545 = vmatprep.mubr.f32.mxu0 0.0
        %546 = vmatmul.mubr.f32.gmra.mxu0 %v326
        %v547 = vpop.f32.mrf.mxu0
        %v548 = vadd.f32 0.0, %v547
        %v549 = vpop.f32.mrf.mxu0
        %550 = vmatprep.mubr.f32.mxu0 0.0
        %551 = vmatmul.mubr.f32.gmra.mxu0 %v329
        %v552 = vpop.f32.mrf.mxu0
        %v553 = vadd.f32 0.0, %v552
        %v554 = vpop.f32.mrf.mxu0
        %555 = vmatprep.mubr.f32.mxu0 0.0
        %556 = vmatmul.mubr.f32.gmra.mxu0 %v332
        %v557 = vpop.f32.mrf.mxu0
        %v558 = vadd.f32 0.0, %v557
        %v559 = vpop.f32.mrf.mxu0
        %560 = vmatprep.mubr.f32.mxu0 0.0
        %561 = vmatmul.mubr.f32.gmra.mxu0 %v335
        %v562 = vpop.f32.mrf.mxu0
        %v563 = vadd.f32 0.0, %v562
        %v564 = vpop.f32.mrf.mxu0
        %565 = vdwg.mxu0
        %v566 = vld [vmem:[%s2] sm:$0xf]
        %v568 = vsel %vm337, %v566, 0
        %570 = vmatprep.subr.mxu0 0.0
        %571 = vmatpush1.msra.mxu0 0.0
        %572 = vmatprep.subr.mxu0 0.0
        %573 = vmatpush1.msra.mxu0 0.0
        %574 = vmatprep.subr.mxu0 0.0
        %575 = vmatpush1.msra.mxu0 0.0
        %576 = vmatprep.subr.mxu0 0.0
        %577 = vmatpush1.msra.mxu0 0.0
        %578 = vmatprep.subr.mxu0 0.0
        %579 = vmatpush1.msra.mxu0 0.0
        %580 = vmatprep.subr.mxu0 0.0
        %581 = vmatpush1.msra.mxu0 0.0
        %582 = vmatprep.subr.mxu0 0.0
        %583 = vmatpush1.msra.mxu0 0.0
        %584 = vmatprep.subr.mxu0 0.0
        %585 = vmatpush1.msra.mxu0 0.0
        %586 = vmatprep.subr.mxu0 0.0
        %587 = vmatpush1.msra.mxu0 0.0
        %588 = vmatprep.subr.mxu0 0.0
        %589 = vmatpush1.msra.mxu0 0.0
        %590 = vmatprep.subr.mxu0 0.0
        %591 = vmatpush1.msra.mxu0 0.0
        %592 = vmatprep.subr.mxu0 0.0
        %593 = vmatpush1.msra.mxu0 0.0
        %594 = vmatprep.subr.mxu0 0.0
        %595 = vmatpush1.msra.mxu0 0.0
        %596 = vmatprep.subr.mxu0 0.0
        %597 = vmatpush1.msra.mxu0 0.0
        %598 = vmatprep.subr.mxu0 0.0
        %599 = vmatpush1.msra.mxu0 0.0
        %600 = vmatprep.subr.mxu0 0.0
        %601 = vmatpush1.msra.mxu0 %v568
        %602 = vmatprep.subr.mxu0 0.0
        %603 = vmatpush2.msra.mxu0 0.0
        %604 = vmatprep.subr.mxu0 0.0
        %605 = vmatpush2.msra.mxu0 0.0
        %606 = vmatprep.subr.mxu0 0.0
        %607 = vmatpush2.msra.mxu0 0.0
        %608 = vmatprep.subr.mxu0 0.0
        %609 = vmatpush2.msra.mxu0 0.0
        %610 = vmatprep.subr.mxu0 0.0
        %611 = vmatpush2.msra.mxu0 0.0
        %612 = vmatprep.subr.mxu0 0.0
        %613 = vmatpush2.msra.mxu0 0.0
        %614 = vmatprep.subr.mxu0 0.0
        %615 = vmatpush2.msra.mxu0 0.0
        %616 = vmatprep.subr.mxu0 0.0
        %617 = vmatpush2.msra.mxu0 0.0
        %618 = vmatprep.subr.mxu0 0.0
        %619 = vmatpush2.msra.mxu0 0.0
        %620 = vmatprep.subr.mxu0 0.0
        %621 = vmatpush2.msra.mxu0 0.0
        %622 = vmatprep.subr.mxu0 0.0
        %623 = vmatpush2.msra.mxu0 0.0
        %624 = vmatprep.subr.mxu0 0.0
        %625 = vmatpush2.msra.mxu0 0.0
        %626 = vmatprep.subr.mxu0 0.0
        %627 = vmatpush2.msra.mxu0 0.0
        %628 = vmatprep.subr.mxu0 0.0
        %629 = vmatpush2.msra.mxu0 0.0
        %630 = vmatprep.subr.mxu0 0.0
        %631 = vmatpush2.msra.mxu0 0.0
        %632 = vmatprep.subr.mxu0 0.0
        %633 = vmatpush2.msra.mxu0 0.0
        %634 = vmatprep.mubr.f32.mxu0 0.0
        %635 = vmatmul.mubr.f32.gmra.mxu0 %v242
        %v636 = vpop.f32.mrf.mxu0
        %v637 = vadd.f32 0.0, %v636
        %v638 = vpop.f32.mrf.mxu0
        %639 = vmatprep.mubr.f32.mxu0 0.0
        %640 = vmatmul.mubr.f32.gmra.mxu0 %v245
        %v641 = vpop.f32.mrf.mxu0
        %v642 = vadd.f32 0.0, %v641
        %v643 = vpop.f32.mrf.mxu0
        %644 = vmatprep.mubr.f32.mxu0 0.0
        %645 = vmatmul.mubr.f32.gmra.mxu0 %v248
        %v646 = vpop.f32.mrf.mxu0
        %v647 = vadd.f32 0.0, %v646
        %v648 = vpop.f32.mrf.mxu0
        %649 = vmatprep.mubr.f32.mxu0 0.0
        %650 = vmatmul.mubr.f32.gmra.mxu0 %v251
        %v651 = vpop.f32.mrf.mxu0
        %v652 = vadd.f32 0.0, %v651
        %v653 = vpop.f32.mrf.mxu0
        %654 = vmatprep.mubr.f32.mxu0 0.0
        %655 = vmatmul.mubr.f32.gmra.mxu0 %v254
        %v656 = vpop.f32.mrf.mxu0
        %v657 = vadd.f32 0.0, %v656
        %v658 = vpop.f32.mrf.mxu0
        %659 = vmatprep.mubr.f32.mxu0 0.0
        %660 = vmatmul.mubr.f32.gmra.mxu0 %v257
        %v661 = vpop.f32.mrf.mxu0
        %v662 = vadd.f32 0.0, %v661
        %v663 = vpop.f32.mrf.mxu0
        %664 = vmatprep.mubr.f32.mxu0 0.0
        %665 = vmatmul.mubr.f32.gmra.mxu0 %v260
        %v666 = vpop.f32.mrf.mxu0
        %v667 = vadd.f32 0.0, %v666
        %v668 = vpop.f32.mrf.mxu0
        %669 = vmatprep.mubr.f32.mxu0 0.0
        %670 = vmatmul.mubr.f32.gmra.mxu0 %v263
        %v671 = vpop.f32.mrf.mxu0
        %v672 = vadd.f32 0.0, %v671
        %v673 = vpop.f32.mrf.mxu0
        %674 = vmatprep.mubr.f32.mxu0 0.0
        %675 = vmatmul.mubr.f32.gmra.mxu0 %v266
        %v676 = vpop.f32.mrf.mxu0
        %v677 = vadd.f32 0.0, %v676
        %v678 = vpop.f32.mrf.mxu0
        %679 = vmatprep.mubr.f32.mxu0 0.0
        %680 = vmatmul.mubr.f32.gmra.mxu0 %v269
        %v681 = vpop.f32.mrf.mxu0
        %v682 = vadd.f32 0.0, %v681
        %v683 = vpop.f32.mrf.mxu0
        %684 = vmatprep.mubr.f32.mxu0 0.0
        %685 = vmatmul.mubr.f32.gmra.mxu0 %v272
        %v686 = vpop.f32.mrf.mxu0
        %v687 = vadd.f32 0.0, %v686
        %v688 = vpop.f32.mrf.mxu0
        %689 = vmatprep.mubr.f32.mxu0 0.0
        %690 = vmatmul.mubr.f32.gmra.mxu0 %v275
        %v691 = vpop.f32.mrf.mxu0
        %v692 = vadd.f32 0.0, %v691
        %v693 = vpop.f32.mrf.mxu0
        %694 = vmatprep.mubr.f32.mxu0 0.0
        %695 = vmatmul.mubr.f32.gmra.mxu0 %v278
        %v696 = vpop.f32.mrf.mxu0
        %v697 = vadd.f32 0.0, %v696
        %v698 = vpop.f32.mrf.mxu0
        %699 = vmatprep.mubr.f32.mxu0 0.0
        %700 = vmatmul.mubr.f32.gmra.mxu0 %v281
        %v701 = vpop.f32.mrf.mxu0
        %v702 = vadd.f32 0.0, %v701
        %v703 = vpop.f32.mrf.mxu0
        %704 = vmatprep.mubr.f32.mxu0 0.0
        %705 = vmatmul.mubr.f32.gmra.mxu0 %v284
        %v706 = vpop.f32.mrf.mxu0
        %v707 = vadd.f32 0.0, %v706
        %v708 = vpop.f32.mrf.mxu0
        %709 = vmatprep.mubr.f32.mxu0 0.0
        %710 = vmatmul.mubr.f32.gmra.mxu0 %v287
        %v711 = vpop.f32.mrf.mxu0
        %v712 = vadd.f32 0.0, %v711
        %v713 = vpop.f32.mrf.mxu0
        %714 = vmatprep.mubr.f32.mxu0 0.0
        %715 = vmatmul.mubr.f32.gmra.mxu0 %v290
        %v716 = vpop.f32.mrf.mxu0
        %v717 = vadd.f32 0.0, %v716
        %v718 = vpop.f32.mrf.mxu0
        %719 = vmatprep.mubr.f32.mxu0 0.0
        %720 = vmatmul.mubr.f32.gmra.mxu0 %v293
        %v721 = vpop.f32.mrf.mxu0
        %v722 = vadd.f32 0.0, %v721
        %v723 = vpop.f32.mrf.mxu0
        %724 = vmatprep.mubr.f32.mxu0 0.0
        %725 = vmatmul.mubr.f32.gmra.mxu0 %v296
        %v726 = vpop.f32.mrf.mxu0
        %v727 = vadd.f32 0.0, %v726
        %v728 = vpop.f32.mrf.mxu0
        %729 = vmatprep.mubr.f32.mxu0 0.0
        %730 = vmatmul.mubr.f32.gmra.mxu0 %v299
        %v731 = vpop.f32.mrf.mxu0
        %v732 = vadd.f32 0.0, %v731
        %v733 = vpop.f32.mrf.mxu0
        %734 = vmatprep.mubr.f32.mxu0 0.0
        %735 = vmatmul.mubr.f32.gmra.mxu0 %v302
        %v736 = vpop.f32.mrf.mxu0
        %v737 = vadd.f32 0.0, %v736
        %v738 = vpop.f32.mrf.mxu0
        %739 = vmatprep.mubr.f32.mxu0 0.0
        %740 = vmatmul.mubr.f32.gmra.mxu0 %v305
        %v741 = vpop.f32.mrf.mxu0
        %v742 = vadd.f32 0.0, %v741
        %v743 = vpop.f32.mrf.mxu0
        %744 = vmatprep.mubr.f32.mxu0 0.0
        %745 = vmatmul.mubr.f32.gmra.mxu0 %v308
        %v746 = vpop.f32.mrf.mxu0
        %v747 = vadd.f32 0.0, %v746
        %v748 = vpop.f32.mrf.mxu0
        %749 = vmatprep.mubr.f32.mxu0 0.0
        %750 = vmatmul.mubr.f32.gmra.mxu0 %v311
        %v751 = vpop.f32.mrf.mxu0
        %v752 = vadd.f32 0.0, %v751
        %v753 = vpop.f32.mrf.mxu0
        %754 = vmatprep.mubr.f32.mxu0 0.0
        %755 = vmatmul.mubr.f32.gmra.mxu0 %v314
        %v756 = vpop.f32.mrf.mxu0
        %v757 = vadd.f32 0.0, %v756
        %v758 = vpop.f32.mrf.mxu0
        %759 = vmatprep.mubr.f32.mxu0 0.0
        %760 = vmatmul.mubr.f32.gmra.mxu0 %v317
        %v761 = vpop.f32.mrf.mxu0
        %v762 = vadd.f32 0.0, %v761
        %v763 = vpop.f32.mrf.mxu0
        %764 = vmatprep.mubr.f32.mxu0 0.0
        %765 = vmatmul.mubr.f32.gmra.mxu0 %v320
        %v766 = vpop.f32.mrf.mxu0
        %v767 = vadd.f32 0.0, %v766
        %v768 = vpop.f32.mrf.mxu0
        %769 = vmatprep.mubr.f32.mxu0 0.0
        %770 = vmatmul.mubr.f32.gmra.mxu0 %v323
        %v771 = vpop.f32.mrf.mxu0
        %v772 = vadd.f32 0.0, %v771
        %v773 = vpop.f32.mrf.mxu0
        %774 = vmatprep.mubr.f32.mxu0 0.0
        %775 = vmatmul.mubr.f32.gmra.mxu0 %v326
        %v776 = vpop.f32.mrf.mxu0
        %v777 = vadd.f32 0.0, %v776
        %v778 = vpop.f32.mrf.mxu0
        %779 = vmatprep.mubr.f32.mxu0 0.0
        %780 = vmatmul.mubr.f32.gmra.mxu0 %v329
        %v781 = vpop.f32.mrf.mxu0
        %v782 = vadd.f32 0.0, %v781
        %v783 = vpop.f32.mrf.mxu0
        %784 = vmatprep.mubr.f32.mxu0 0.0
        %785 = vmatmul.mubr.f32.gmra.mxu0 %v332
        %v786 = vpop.f32.mrf.mxu0
        %v787 = vadd.f32 0.0, %v786
        %v788 = vpop.f32.mrf.mxu0
        %789 = vmatprep.mubr.f32.mxu0 0.0
        %790 = vmatmul.mubr.f32.gmra.mxu0 %v335
        %v791 = vpop.f32.mrf.mxu0
        %v792 = vadd.f32 0.0, %v791
        %v793 = vpop.f32.mrf.mxu0
        %794 = vdwg.mxu0
        %v795 = vld [vmem:[#allocation2] sm:$0x1]
        %vm796 = vcmask 130048
        %v797 = vsel %vm796, %v408, -inf
        %v798 = vsel %vm796, %v413, -inf
        %v799 = vsel %vm796, %v418, -inf
        %v800 = vsel %vm796, %v423, -inf
        %v801 = vsel %vm796, %v428, -inf
        %v802 = vmax.f32 %v797, %v801
        %v803 = vsel %vm796, %v433, -inf
        %v804 = vmax.f32 %v798, %v803
        %v805 = vsel %vm796, %v438, -inf
        %v806 = vmax.f32 %v799, %v805
        %v807 = vsel %vm796, %v443, -inf
        %v808 = vmax.f32 %v800, %v807
        %v809 = vsel %vm796, %v448, -inf
        %v810 = vmax.f32 %v802, %v809
        %v811 = vsel %vm796, %v453, -inf
        %v812 = vmax.f32 %v804, %v811
        %v813 = vsel %vm796, %v458, -inf
        %v814 = vmax.f32 %v806, %v813
        %v815 = vsel %vm796, %v463, -inf
        %v816 = vmax.f32 %v808, %v815
        %v817 = vsel %vm796, %v468, -inf
        %v818 = vmax.f32 %v810, %v817
        %v819 = vsel %vm796, %v473, -inf
        %v820 = vmax.f32 %v812, %v819
        %v821 = vsel %vm796, %v478, -inf
        %v822 = vmax.f32 %v814, %v821
        %v823 = vsel %vm796, %v483, -inf
        %v824 = vmax.f32 %v816, %v823
        %v825 = vsel %vm796, %v488, -inf
        %v826 = vmax.f32 %v818, %v825
        %v827 = vsel %vm796, %v493, -inf
        %v828 = vmax.f32 %v820, %v827
        %v829 = vsel %vm796, %v498, -inf
        %v830 = vmax.f32 %v822, %v829
        %v831 = vsel %vm796, %v503, -inf
        %v832 = vmax.f32 %v824, %v831
        %v833 = vsel %vm796, %v508, -inf
        %v834 = vmax.f32 %v826, %v833
        %v835 = vsel %vm796, %v513, -inf
        %v836 = vmax.f32 %v828, %v835
        %v837 = vsel %vm796, %v518, -inf
        %v838 = vmax.f32 %v830, %v837
        %v839 = vsel %vm796, %v523, -inf
        %v840 = vmax.f32 %v832, %v839
        %v841 = vsel %vm796, %v528, -inf
        %v842 = vmax.f32 %v834, %v841
        %v843 = vsel %vm796, %v533, -inf
        %v844 = vmax.f32 %v836, %v843
        %v845 = vsel %vm796, %v538, -inf
        %v846 = vmax.f32 %v838, %v845
        %v847 = vsel %vm796, %v543, -inf
        %v848 = vmax.f32 %v840, %v847
        %v849 = vsel %vm796, %v548, -inf
        %v850 = vmax.f32 %v842, %v849
        %v851 = vsel %vm796, %v553, -inf
        %v852 = vmax.f32 %v844, %v851
        %v853 = vsel %vm796, %v558, -inf
        %v854 = vmax.f32 %v846, %v853
        %v855 = vsel %vm796, %v563, -inf
        %v856 = vmax.f32 %v848, %v855
        %v857 = vmax.f32 %v850, %v852
        %v858 = vmax.f32 %v854, %v856
        %v859 = vmax.f32 %v857, %v858
        %v860 = vrot.slane %v859, 4
        %v861 = vmax.f32 %v859, %v860
        %v862 = vrot.slane %v861, 2
        %v863 = vmax.f32 %v861, %v862
        %v864 = vrot.slane %v863, 1
        %v865 = vmax.f32 %v863, %v864
        %v866 = vmax.f32 %v795, %v865
        %v867 = vsub.f32 %v795, %v866
        %v868 = vmul.f32 %v867, 1.442695
        %v869 = vpow.pop %v868
        %v871 = vlaneseq
        %v872 = vshrl.u32 %v871, 7
        %v873 = vsub.s32 0, %v872
        %v874 = vrot.slane %v866, %v873
        %v876 = vsub.f32 %v408, %v874
        %v877 = vsub.f32 %v413, %v874
        %v878 = vsub.f32 %v418, %v874
        %v879 = vsub.f32 %v423, %v874
        %v880 = vsub.f32 %v428, %v874
        %v881 = vsub.f32 %v433, %v874
        %v882 = vsub.f32 %v438, %v874
        %v883 = vsub.f32 %v443, %v874
        %v884 = vsub.f32 %v448, %v874
        %v885 = vsub.f32 %v453, %v874
        %v886 = vsub.f32 %v458, %v874
        %v887 = vsub.f32 %v463, %v874
        %v888 = vsub.f32 %v468, %v874
        %v889 = vsub.f32 %v473, %v874
        %v890 = vsub.f32 %v478, %v874
        %v891 = vsub.f32 %v483, %v874
        %v892 = vsub.f32 %v488, %v874
        %v893 = vsub.f32 %v493, %v874
        %v894 = vsub.f32 %v498, %v874
        %v895 = vsub.f32 %v503, %v874
        %v896 = vsub.f32 %v508, %v874
        %v897 = vsub.f32 %v513, %v874
        %v898 = vsub.f32 %v518, %v874
        %v899 = vsub.f32 %v523, %v874
        %v900 = vsub.f32 %v528, %v874
        %v901 = vsub.f32 %v533, %v874
        %v902 = vsub.f32 %v538, %v874
        %v903 = vsub.f32 %v543, %v874
        %v904 = vsub.f32 %v548, %v874
        %v905 = vsub.f32 %v553, %v874
        %v906 = vsub.f32 %v558, %v874
        %v907 = vsub.f32 %v563, %v874
        %v908 = vmul.f32 %v876, 1.442695
        %v909 = vpow.pop %v908
        %v910 = vmul.f32 %v877, 1.442695
        %v911 = vpow.pop %v910
        %v912 = vmul.f32 %v878, 1.442695
        %v913 = vpow.pop %v912
        %v914 = vmul.f32 %v879, 1.442695
        %v915 = vpow.pop %v914
        %v916 = vmul.f32 %v880, 1.442695
        %v917 = vpow.pop %v916
        %v918 = vmul.f32 %v881, 1.442695
        %v919 = vpow.pop %v918
        %v920 = vmul.f32 %v882, 1.442695
        %v921 = vpow.pop %v920
        %v922 = vmul.f32 %v883, 1.442695
        %v923 = vpow.pop %v922
        %v924 = vmul.f32 %v884, 1.442695
        %v925 = vpow.pop %v924
        %v926 = vmul.f32 %v885, 1.442695
        %v927 = vpow.pop %v926
        %v928 = vmul.f32 %v886, 1.442695
        %v929 = vpow.pop %v928
        %v930 = vmul.f32 %v887, 1.442695
        %v931 = vpow.pop %v930
        %v932 = vmul.f32 %v888, 1.442695
        %v933 = vpow.pop %v932
        %v934 = vmul.f32 %v889, 1.442695
        %v935 = vpow.pop %v934
        %v936 = vmul.f32 %v890, 1.442695
        %v937 = vpow.pop %v936
        %v938 = vmul.f32 %v891, 1.442695
        %v939 = vpow.pop %v938
        %v940 = vmul.f32 %v892, 1.442695
        %v941 = vpow.pop %v940
        %v942 = vmul.f32 %v893, 1.442695
        %v943 = vpow.pop %v942
        %v944 = vmul.f32 %v894, 1.442695
        %v945 = vpow.pop %v944
        %v946 = vmul.f32 %v895, 1.442695
        %v947 = vpow.pop %v946
        %v948 = vmul.f32 %v896, 1.442695
        %v949 = vpow.pop %v948
        %v950 = vmul.f32 %v897, 1.442695
        %v951 = vpow.pop %v950
        %v952 = vmul.f32 %v898, 1.442695
        %v953 = vpow.pop %v952
        %v954 = vmul.f32 %v899, 1.442695
        %v955 = vpow.pop %v954
        %v956 = vmul.f32 %v900, 1.442695
        %v957 = vpow.pop %v956
        %v958 = vmul.f32 %v901, 1.442695
        %v959 = vpow.pop %v958
        %v960 = vmul.f32 %v902, 1.442695
        %v961 = vpow.pop %v960
        %v962 = vmul.f32 %v903, 1.442695
        %v963 = vpow.pop %v962
        %v964 = vmul.f32 %v904, 1.442695
        %v965 = vpow.pop %v964
        %v966 = vmul.f32 %v905, 1.442695
        %v967 = vpow.pop %v966
        %v968 = vmul.f32 %v906, 1.442695
        %v969 = vpow.pop %v968
        %v970 = vmul.f32 %v907, 1.442695
        %v971 = vpow.pop %v970
        %v972 = vld [vmem:[#allocation3] sm:$0x1]
        %v973 = vmul.f32 %v869, %v972
        %v974 = vsel %vm796, %v909, 0.0
        %v975 = vsel %vm796, %v911, 0.0
        %v976 = vadd.f32 %v974, %v975
        %v977 = vsel %vm796, %v913, 0.0
        %v978 = vadd.f32 %v976, %v977
        %v979 = vsel %vm796, %v915, 0.0
        %v980 = vadd.f32 %v978, %v979
        %v981 = vsel %vm796, %v917, 0.0
        %v982 = vadd.f32 %v980, %v981
        %v983 = vsel %vm796, %v919, 0.0
        %v984 = vadd.f32 %v982, %v983
        %v985 = vsel %vm796, %v921, 0.0
        %v986 = vadd.f32 %v984, %v985
        %v987 = vsel %vm796, %v923, 0.0
        %v988 = vadd.f32 %v986, %v987
        %v989 = vsel %vm796, %v925, 0.0
        %v990 = vadd.f32 %v988, %v989
        %v991 = vsel %vm796, %v927, 0.0
        %v992 = vadd.f32 %v990, %v991
        %v993 = vsel %vm796, %v929, 0.0
        %v994 = vadd.f32 %v992, %v993
        %v995 = vsel %vm796, %v931, 0.0
        %v996 = vadd.f32 %v994, %v995
        %v997 = vsel %vm796, %v933, 0.0
        %v998 = vadd.f32 %v996, %v997
        %v999 = vsel %vm796, %v935, 0.0
        %v1000 = vadd.f32 %v998, %v999
        %v1001 = vsel %vm796, %v937, 0.0
        %v1002 = vadd.f32 %v1000, %v1001
        %v1003 = vsel %vm796, %v939, 0.0
        %v1004 = vadd.f32 %v1002, %v1003
        %v1005 = vsel %vm796, %v941, 0.0
        %v1006 = vadd.f32 %v1004, %v1005
        %v1007 = vsel %vm796, %v943, 0.0
        %v1008 = vadd.f32 %v1006, %v1007
        %v1009 = vsel %vm796, %v945, 0.0
        %v1010 = vadd.f32 %v1008, %v1009
        %v1011 = vsel %vm796, %v947, 0.0
        %v1012 = vadd.f32 %v1010, %v1011
        %v1013 = vsel %vm796, %v949, 0.0
        %v1014 = vadd.f32 %v1012, %v1013
        %v1015 = vsel %vm796, %v951, 0.0
        %v1016 = vadd.f32 %v1014, %v1015
        %v1017 = vsel %vm796, %v953, 0.0
        %v1018 = vadd.f32 %v1016, %v1017
        %v1019 = vsel %vm796, %v955, 0.0
        %v1020 = vadd.f32 %v1018, %v1019
        %v1021 = vsel %vm796, %v957, 0.0
        %v1022 = vadd.f32 %v1020, %v1021
        %v1023 = vsel %vm796, %v959, 0.0
        %v1024 = vadd.f32 %v1022, %v1023
        %v1025 = vsel %vm796, %v961, 0.0
        %v1026 = vadd.f32 %v1024, %v1025
        %v1027 = vsel %vm796, %v963, 0.0
        %v1028 = vadd.f32 %v1026, %v1027
        %v1029 = vsel %vm796, %v965, 0.0
        %v1030 = vadd.f32 %v1028, %v1029
        %v1031 = vsel %vm796, %v967, 0.0
        %v1032 = vadd.f32 %v1030, %v1031
        %v1033 = vsel %vm796, %v969, 0.0
        %v1034 = vadd.f32 %v1032, %v1033
        %v1035 = vsel %vm796, %v971, 0.0
        %v1036 = vadd.f32 %v1034, %v1035
        %v1037 = vrot.slane %v1036, 4
        %v1038 = vadd.f32 %v1036, %v1037
        %v1039 = vrot.slane %v1038, 2
        %v1040 = vadd.f32 %v1038, %v1039
        %v1041 = vrot.slane %v1040, 1
        %v1042 = vadd.f32 %v1040, %v1041
        %v1043 = vadd.f32 %v973, %v1042
        %vm1044 = vcmask 122880
        %1045 = vst.msk [vmem:[#allocation3] sm:$0x1] %vm1044, %v1043
        %1046 = vxpose.xlu0.b32.start [1/16] %v637, 128
        %1047 = vxpose.xlu0.b32.cont [2/16] %v642, 128
        %1048 = vxpose.xlu0.b32.cont [3/16] %v647, 128
        %1049 = vxpose.xlu0.b32.cont [4/16] %v652, 128
        %1050 = vxpose.xlu0.b32.cont [5/16] %v657, 128
        %1051 = vxpose.xlu0.b32.cont [6/16] %v662, 128
        %1052 = vxpose.xlu0.b32.cont [7/16] %v667, 128
        %1053 = vxpose.xlu0.b32.cont [8/16] %v672, 128
        %1054 = vxpose.xlu0.b32.cont [9/16] %v677, 128
        %1055 = vxpose.xlu0.b32.cont [10/16] %v682, 128
        %1056 = vxpose.xlu0.b32.cont [11/16] %v687, 128
        %1057 = vxpose.xlu0.b32.cont [12/16] %v692, 128
        %1058 = vxpose.xlu0.b32.cont [13/16] %v697, 128
        %1059 = vxpose.xlu0.b32.cont [14/16] %v702, 128
        %1060 = vxpose.xlu0.b32.cont [15/16] %v707, 128
        %1061 = vxpose.xlu0.b32.end [16/16] %v712, 128
        %v1062 = vpop.trf.xlu0
        %v1063 = vpop.trf.xlu0
        %v1064 = vpop.trf.xlu0
        %v1065 = vpop.trf.xlu0
        %v1066 = vpop.trf.xlu0
        %v1067 = vpop.trf.xlu0
        %v1068 = vpop.trf.xlu0
        %v1069 = vpop.trf.xlu0
        %v1070 = vpop.trf.xlu0
        %v1071 = vpop.trf.xlu0
        %v1072 = vpop.trf.xlu0
        %v1073 = vpop.trf.xlu0
        %v1074 = vpop.trf.xlu0
        %v1075 = vpop.trf.xlu0
        %v1076 = vpop.trf.xlu0
        %v1077 = vpop.trf.xlu0
        %1078 = vxpose.xlu0.b32.start [1/16] %v717, 128
        %1079 = vxpose.xlu0.b32.cont [2/16] %v722, 128
        %1080 = vxpose.xlu0.b32.cont [3/16] %v727, 128
        %1081 = vxpose.xlu0.b32.cont [4/16] %v732, 128
        %1082 = vxpose.xlu0.b32.cont [5/16] %v737, 128
        %1083 = vxpose.xlu0.b32.cont [6/16] %v742, 128
        %1084 = vxpose.xlu0.b32.cont [7/16] %v747, 128
        %1085 = vxpose.xlu0.b32.cont [8/16] %v752, 128
        %1086 = vxpose.xlu0.b32.cont [9/16] %v757, 128
        %1087 = vxpose.xlu0.b32.cont [10/16] %v762, 128
        %1088 = vxpose.xlu0.b32.cont [11/16] %v767, 128
        %1089 = vxpose.xlu0.b32.cont [12/16] %v772, 128
        %1090 = vxpose.xlu0.b32.cont [13/16] %v777, 128
        %1091 = vxpose.xlu0.b32.cont [14/16] %v782, 128
        %1092 = vxpose.xlu0.b32.cont [15/16] %v787, 128
        %1093 = vxpose.xlu0.b32.end [16/16] %v792, 128
        %v1094 = vpop.trf.xlu0
        %v1095 = vpop.trf.xlu0
        %v1096 = vpop.trf.xlu0
        %v1097 = vpop.trf.xlu0
        %v1098 = vpop.trf.xlu0
        %v1099 = vpop.trf.xlu0
        %v1100 = vpop.trf.xlu0
        %v1101 = vpop.trf.xlu0
        %v1102 = vpop.trf.xlu0
        %v1103 = vpop.trf.xlu0
        %v1104 = vpop.trf.xlu0
        %v1105 = vpop.trf.xlu0
        %v1106 = vpop.trf.xlu0
        %v1107 = vpop.trf.xlu0
        %v1108 = vpop.trf.xlu0
        %v1109 = vpop.trf.xlu0
        %1110 = vmatprep.subr.mxu0 0.0
        %1111 = vmatpush1.msra.mxu0 %v939
        %1112 = vmatprep.subr.mxu0 0.0
        %1113 = vmatpush1.msra.mxu0 %v937
        %1114 = vmatprep.subr.mxu0 0.0
        %1115 = vmatpush1.msra.mxu0 %v935
        %1116 = vmatprep.subr.mxu0 0.0
        %1117 = vmatpush1.msra.mxu0 %v933
        %1118 = vmatprep.subr.mxu0 0.0
        %1119 = vmatpush1.msra.mxu0 %v931
        %1120 = vmatprep.subr.mxu0 0.0
        %1121 = vmatpush1.msra.mxu0 %v929
        %1122 = vmatprep.subr.mxu0 0.0
        %1123 = vmatpush1.msra.mxu0 %v927
        %1124 = vmatprep.subr.mxu0 0.0
        %1125 = vmatpush1.msra.mxu0 %v925
        %1126 = vmatprep.subr.mxu0 0.0
        %1127 = vmatpush1.msra.mxu0 %v923
        %1128 = vmatprep.subr.mxu0 0.0
        %1129 = vmatpush1.msra.mxu0 %v921
        %1130 = vmatprep.subr.mxu0 0.0
        %1131 = vmatpush1.msra.mxu0 %v919
        %1132 = vmatprep.subr.mxu0 0.0
        %1133 = vmatpush1.msra.mxu0 %v917
        %1134 = vmatprep.subr.mxu0 0.0
        %1135 = vmatpush1.msra.mxu0 %v915
        %1136 = vmatprep.subr.mxu0 0.0
        %1137 = vmatpush1.msra.mxu0 %v913
        %1138 = vmatprep.subr.mxu0 0.0
        %1139 = vmatpush1.msra.mxu0 %v911
        %1140 = vmatprep.subr.mxu0 0.0
        %1141 = vmatpush1.msra.mxu0 %v909
        %1142 = vmatprep.subr.mxu0 0.0
        %1143 = vmatpush2.msra.mxu0 %v971
        %1144 = vmatprep.subr.mxu0 0.0
        %1145 = vmatpush2.msra.mxu0 %v969
        %1146 = vmatprep.subr.mxu0 0.0
        %1147 = vmatpush2.msra.mxu0 %v967
        %1148 = vmatprep.subr.mxu0 0.0
        %1149 = vmatpush2.msra.mxu0 %v965
        %1150 = vmatprep.subr.mxu0 0.0
        %1151 = vmatpush2.msra.mxu0 %v963
        %1152 = vmatprep.subr.mxu0 0.0
        %1153 = vmatpush2.msra.mxu0 %v961
        %1154 = vmatprep.subr.mxu0 0.0
        %1155 = vmatpush2.msra.mxu0 %v959
        %1156 = vmatprep.subr.mxu0 0.0
        %1157 = vmatpush2.msra.mxu0 %v957
        %1158 = vmatprep.subr.mxu0 0.0
        %1159 = vmatpush2.msra.mxu0 %v955
        %1160 = vmatprep.subr.mxu0 0.0
        %1161 = vmatpush2.msra.mxu0 %v953
        %1162 = vmatprep.subr.mxu0 0.0
        %1163 = vmatpush2.msra.mxu0 %v951
        %1164 = vmatprep.subr.mxu0 0.0
        %1165 = vmatpush2.msra.mxu0 %v949
        %1166 = vmatprep.subr.mxu0 0.0
        %1167 = vmatpush2.msra.mxu0 %v947
        %1168 = vmatprep.subr.mxu0 0.0
        %1169 = vmatpush2.msra.mxu0 %v945
        %1170 = vmatprep.subr.mxu0 0.0
        %1171 = vmatpush2.msra.mxu0 %v943
        %1172 = vmatprep.subr.mxu0 0.0
        %1173 = vmatpush2.msra.mxu0 %v941
        %1174 = vmatprep.mubr.f32.mxu0 %v1094
        %1175 = vmatmul.mubr.f32.gmra.mxu0 %v1062
        %v1176 = vpop.f32.mrf.mxu0
        %v1177 = vadd.f32 0.0, %v1176
        %v1178 = vpop.f32.mrf.mxu0
        %1179 = vmatprep.mubr.f32.mxu0 %v1095
        %1180 = vmatmul.mubr.f32.gmra.mxu0 %v1063
        %v1181 = vpop.f32.mrf.mxu0
        %v1182 = vadd.f32 0.0, %v1181
        %v1183 = vpop.f32.mrf.mxu0
        %1184 = vdwg.mxu0
        %v1185 = vld [vmem:[#allocation4] sm:$0xff]
        %v1186 = vld [vmem:[#allocation4 + $0x8] sm:$0xff]
        %v1188 = vlaneseq
        %v1189 = vshrl.u32 %v1188, 7
        %v1190 = vsub.s32 0, %v1189
        %v1191 = vrot.slane %v869, %v1190
        %v1193 = vmul.f32 %v1191, %v1185
        %v1194 = vmul.f32 %v1191, %v1186
        %v1195 = vadd.f32 %v1193, %v1177
        %v1196 = vadd.f32 %v1194, %v1182
        %1197 = vst.msk [vmem:[#allocation4] sm:$0xff] %vm796, %v1195
        %1198 = vst.msk [vmem:[#allocation4 + $0x8] sm:$0xff] %vm796, %v1196
        %1199 = vst.msk [vmem:[#allocation2] sm:$0x1] %vm1044, %v866
        // Predicated region
        $region37: #{tpu_custom_call.1} parent=31 // pred_check
          %p1200 = pneg %p197
        $region38: #{tpu_custom_call.1} parent=31 // pred_check_branch
          %1202 = sbr.rel (%p1200) target = $region40
        $region39: #{tpu_custom_call.1} parent=31 // pred_region
          %v1203 = vld [vmem:[#allocation3] sm:$0x1]
          %v1204 = vrcp.pop %v1203
          %v1205 = vmul.f32 0.35355338, %v1204
          %v1206 = vld [vmem:[#allocation4] sm:$0xff]
          %v1207 = vld [vmem:[#allocation4 + $0x8] sm:$0xff]
          %v1209 = vlaneseq
          %v1210 = vshrl.u32 %v1209, 7
          %v1211 = vsub.s32 0, %v1210
          %v1212 = vrot.slane %v1205, %v1211
          %v1214 = vmul.f32 %v1206, %v1212
          %v1215 = vmul.f32 %v1207, %v1212
          %1216 = vxpose.xlu0.b32.start [1/16] %v1214, 128
          %1217 = vxpose.xlu0.b32.cont [2/16] %v1215, 128
          %1218 = vxpose.xlu0.b32.cont [3/16] 0.0, 128
          %1219 = vxpose.xlu0.b32.cont [4/16] 0.0, 128
          %1220 = vxpose.xlu0.b32.cont [5/16] 0.0, 128
          %1221 = vxpose.xlu0.b32.cont [6/16] 0.0, 128
          %1222 = vxpose.xlu0.b32.cont [7/16] 0.0, 128
          %1223 = vxpose.xlu0.b32.cont [8/16] 0.0, 128
          %1224 = vxpose.xlu0.b32.cont [9/16] 0.0, 128
          %1225 = vxpose.xlu0.b32.cont [10/16] 0.0, 128
          %1226 = vxpose.xlu0.b32.cont [11/16] 0.0, 128
          %1227 = vxpose.xlu0.b32.cont [12/16] 0.0, 128
          %1228 = vxpose.xlu0.b32.cont [13/16] 0.0, 128
          %1229 = vxpose.xlu0.b32.cont [14/16] 0.0, 128
          %1230 = vxpose.xlu0.b32.cont [15/16] 0.0, 128
          %1231 = vxpose.xlu0.b32.end [16/16] 0.0, 128
          %v1232 = vpop.trf.xlu0
          %v1233 = vpop.trf.xlu0
          %v1234 = vpop.trf.xlu0
          %v1235 = vpop.trf.xlu0
          %v1236 = vpop.trf.xlu0
          %v1237 = vpop.trf.xlu0
          %v1238 = vpop.trf.xlu0
          %v1239 = vpop.trf.xlu0
          %v1240 = vpop.trf.xlu0
          %v1241 = vpop.trf.xlu0
          %v1242 = vpop.trf.xlu0
          %v1243 = vpop.trf.xlu0
          %v1244 = vpop.trf.xlu0
          %v1245 = vpop.trf.xlu0
          %v1246 = vpop.trf.xlu0
          %v1247 = vpop.trf.xlu0
          %1248 = vst.msk [vmem:[%s186] sm:$0xff] %vm796, %v1232
          %1249 = vst.msk [vmem:[%s186 + $0x8] sm:$0xff] %vm796, %v1233
        $region40: #{tpu_custom_call.1} parent=31 // pred_fallthru
          _
        %s1250 = sand.u32 %s107, 1
        %s1251 = scalar_lea.sflag [#allocation6], %s1250
        %s1252 = sand.u32 %s107, 1
        %s1253 = smul.addr %s1252, 16
        %s1254 = scalar_lea.vmem [#allocation5], %s1253
        // Predicated region
        $region41: #{tpu_custom_call.1} parent=31 // pred_check
          %p1255 = pneg %p117
        $region42: #{tpu_custom_call.1} parent=31 // pred_check_branch
          %1257 = sbr.rel (%p1255) target = $region44
        $region43: #{tpu_custom_call.1} parent=31 // pred_region
          %s1259 = ssub.s32 256, 256
          %1260 = vsyncadd %s1251, %s1259
          %s1261 = smul.addr %s21, 2
          %s1262 = smul.addr %s1261, 128
          %s1263 = scalar_lea.hbm %s3, %s1262
          %s1264 = sshll.u32 %s1254, 4
          %s1265 = int_to_ptr.vmem [resolvable:$true] %s1264
          %1270 = dma.vmem_to_hbm [thread:$0]  %s1265, 256, %s1263, %s1251, 128, 128, 8
        $region44: #{tpu_custom_call.1} parent=31 // pred_fallthru
          _
      $region32: #{tpu_custom_call.1} parent=5 // pred_fallthru
        _
      %p1271 = scmp.le.s32.totalorder 2, %s12
      // Predicated region
      $region45: #{tpu_custom_call.1} parent=5 // pred_check
        %p1272 = pneg %p1271
      $region46: #{tpu_custom_call.1} parent=5 // pred_check_branch
        %1274 = sbr.rel (%p1272) target = $region48
      $region47: #{tpu_custom_call.1} parent=5 // pred_region
        %s1275 = ssub.s32 %s12, 2
        // Predicated region
        $region49: #{tpu_custom_call.1} parent=47 // pred_check
          %p1276 = pneg %p123
        $region50: #{tpu_custom_call.1} parent=47 // pred_check_branch
          %1278 = sbr.rel (%p1276) target = $region52
        $region51: #{tpu_custom_call.1} parent=47 // pred_region
          %s1279 = sand.u32 %s108, 1
          %s1280 = scalar_lea.sflag [#allocation6], %s1279
          %s1281 = sand.u32 %s108, 1
          %s1282 = smul.addr %s1281, 16
          %s1283 = scalar_lea.vmem [#allocation5], %s1282
          %1284 = dma.done %s1280, 256
        $region52: #{tpu_custom_call.1} parent=47 // pred_fallthru
          _
      $region48: #{tpu_custom_call.1} parent=5 // pred_fallthru
        _
    $region6: #{tpu_custom_call.1} parent=1 // loop_footer
      %s16 = sadd.s32 1, %s12
    $region7: #{tpu_custom_call.1} parent=1 // loop_footer_branch
      %11 = sbr.rel target = $region3
    $region8: #{tpu_custom_call.1} parent=1 // loop_exit
      _
    %1285 = vsyncpa [#allocation6], 1
    %s1286 = scalar_lea.sflag [#allocation6], 1
    %1287 = vsyncpa %s1286, 1

</llo_original>
